<compile_context>
chip_gen: v6e
topology: v6e:2x2x1
jax: 0.10.0
libtpu: 0.0.40
codegen_flags: <defaults>
</compile_context>

<pallas_src>
import jax
import jax.numpy as jnp
from jax.experimental import pallas as pl
from jax.experimental.pallas import tpu as pltpu


def _round_up(x: int, m: int) -> int:
    return ((x + m - 1) // m) * m


def _resident_spec(block_shape):
    """BlockSpec for a grid-invariant operand; single-buffered when supported."""
    idx = lambda i: (0, 0)
    try:
        return pl.BlockSpec(block_shape, idx, pipeline_mode=pl.Buffered(1))
    except TypeError:  # older Pallas without pipeline_mode kwarg
        return pl.BlockSpec(block_shape, idx)


# ---------------------------------------------------------------------------
# Kernel body: one batch tile -> Linear -> LeakyReLU(0.1) -> Linear -> Tanh.
# ---------------------------------------------------------------------------
def generator_kernel(x_ref, w1_ref, b1_ref, w2_ref, b2_ref, o_ref):
    # Cast x to the MXU dtype in-kernel (cheap VPU op, hidden under the matmul).
    x = x_ref[...].astype(w1_ref.dtype)
    # Linear 1: bf16 operands on the MXU, f32 accumulation.
    h = jnp.dot(x, w1_ref[...], preferred_element_type=jnp.float32)
    # Bias + LeakyReLU(0.1) stay in f32 (exact vs. the reference math).
    h = h + b1_ref[...]                         # (tb, Hp) + (1, Hp) broadcast
    h = jnp.where(h >= 0, h, 0.1 * h)
    # Linear 2: only the MXU operand is downcast.
    y = jnp.dot(h.astype(w2_ref.dtype), w2_ref[...],
                preferred_element_type=jnp.float32)
    y = y + b2_ref[...]                         # (tb, Op) + (1, Op) broadcast
    o_ref[...] = jnp.tanh(y).astype(o_ref.dtype)


# ---------------------------------------------------------------------------
# One-time parameter preparation (call once, cache, reuse across forwards).
# ---------------------------------------------------------------------------
def prepare_generator_params(w1, b1, w2, b2, mxu_dtype=jnp.bfloat16):
    """Pad feature dims to lane-dense multiples of 128 and cast weights to the MXU dtype.

    w1: (D_in, H), b1: (1, H), w2: (H, O), b2: (1, O)  (already transposed vs. PyTorch).
    """
    D_in, H = w1.shape
    O = w2.shape[1]
    Hp = _round_up(H, 128)
    Op = _round_up(O, 128)
    f32 = jnp.float32
    w1p = jnp.zeros((D_in, Hp), mxu_dtype).at[:, :H].set(w1.astype(mxu_dtype))
    b1p = jnp.zeros((1, Hp), f32).at[:, :H].set(b1.astype(f32))
    w2p = jnp.zeros((Hp, Op), mxu_dtype).at[:H, :O].set(w2.astype(mxu_dtype))
    b2p = jnp.zeros((1, Op), f32).at[:, :O].set(b2.astype(f32))
    return (w1p, b1p, w2p, b2p, H, O)


# ---------------------------------------------------------------------------
# Forward pass.
# ---------------------------------------------------------------------------
def generator_forward(x, prepared_params, *, batch_tile=None, out_dtype=None):
    """x: (B, D_in) -> (B, O).  `prepared_params` comes from prepare_generator_params."""
    w1p, b1p, w2p, b2p, H, O = prepared_params
    B, D_in = x.shape
    assert w1p.shape[0] == D_in, "x feature dim does not match prepared params"
    Hp, Op = w1p.shape[1], w2p.shape[1]
    out_dtype = x.dtype if out_dtype is None else out_dtype

    x_isz = jnp.dtype(x.dtype).itemsize
    w_isz = jnp.dtype(w1p.dtype).itemsize
    o_isz = jnp.dtype(out_dtype).itemsize

    # --- VMEM budget (post-Buffered(1) footprint) -----------------------------------
    try:
        vmem_phys = int(pltpu.get_tpu_info().vmem_capacity_bytes)
    except Exception:
        vmem_phys = 64 * 2**20                 # conservative: v7x per-TC VMEM
    vmem_cap = vmem_phys * 7 // 8              # headroom for compiler scratch / sems

    def footprint(tb):
        return ((D_in * Hp + Hp * Op) * w_isz      # weights, single-buffered
                + (Hp + Op) * 4                    # biases, single-buffered (f32)
                + 2 * tb * D_in * x_isz            # x tile, double-buffered
                + 2 * tb * Op * o_isz              # out tile, double-buffered
                + tb * (Hp + Op) * 4)              # live f32 intermediates (h, y)

    # --- Batch tile: >= 2 (usually >= 4) grid steps, cap 512 rows, multiple of 8 -----
    if batch_tile is None:
        batch_tile = min(512, _round_up(pl.cdiv(B, 4), 8))
    tb = max(8, _round_up(batch_tile, 8))
    while tb > 8 and footprint(tb) + (8 << 20) > vmem_cap:
        tb = _round_up(tb // 2, 8)             # shrink until it fits
    Bp = _round_up(B, tb)

    vmem_limit = int(max(32 << 20, min(footprint(tb) + (8 << 20), vmem_cap)))

    # Pad batch only if needed; original dtype, no feature padding, no cast.
    xp = x if Bp == B else jnp.pad(x, ((0, Bp - B), (0, 0)))

    cost = pl.CostEstimate(
        flops=2 * Bp * (D_in * Hp + Hp * Op),
        transcendentals=Bp * Op,               # tanh
        bytes_accessed=(Bp * D_in * x_isz
                        + (w1p.size + w2p.size) * w_isz
                        + (b1p.size + b2p.size) * 4
                        + Bp * Op * o_isz))

    # TODO(synk): for very large H/O on v7x (64 MiB VMEM) add an Hp grid axis ("arbitrary")
    # with an f32 accumulator instead of keeping both weights VMEM-resident.
    out = pl.pallas_call(
        generator_kernel,
        out_shape=jax.ShapeDtypeStruct((Bp, Op), out_dtype),
        grid_spec=pltpu.PrefetchScalarGridSpec(
            num_scalar_prefetch=0,
            grid=(Bp // tb,),
            in_specs=[
                pl.BlockSpec((tb, D_in), lambda i: (i, 0)),   # x batch tile (orig dtype)
                _resident_spec((D_in, Hp)),                   # W1 (resident, 1 buffer)
                _resident_spec((1, Hp)),                      # b1 (resident, f32)
                _resident_spec((Hp, Op)),                     # W2 (resident, 1 buffer)
                _resident_spec((1, Op)),                      # b2 (resident, f32)
            ],
            out_specs=pl.BlockSpec((tb, Op), lambda i: (i, 0)),
        ),
        compiler_params=pltpu.CompilerParams(
            dimension_semantics=("parallel",),
            vmem_limit_bytes=vmem_limit),
        cost_estimate=cost,
    )(xp, w1p, b1p, w2p, b2p)

    # Slice the valid region back out (padding columns/rows are exact zero contributions).
    return out[:B, :O]


# ---------------------------------------------------------------------------
# Params + reference (same math as the kernel: bf16 MXU operands, f32 everything else).
# ---------------------------------------------------------------------------
def init_generator_params(key, input_shape, hidden_units, output_shape,
                          dtype=jnp.float32):
    """Deterministic init mimicking PyTorch nn.Linear default U(-1/sqrt(fan_in), ..)."""
    k1, k2, k3, k4 = jax.random.split(key, 4)
    lim1 = 1.0 / jnp.sqrt(jnp.array(input_shape, dtype))
    lim2 = 1.0 / jnp.sqrt(jnp.array(hidden_units, dtype))
    # Stored as (in, out) == transpose of PyTorch's (out, in) weight.
    w1 = jax.random.uniform(k1, (input_shape, hidden_units), dtype, -lim1, lim1)
    b1 = jax.random.uniform(k2, (1, hidden_units), dtype, -lim1, lim1)
    w2 = jax.random.uniform(k3, (hidden_units, output_shape), dtype, -lim2, lim2)
    b2 = jax.random.uniform(k4, (1, output_shape), dtype, -lim2, lim2)
    return w1, b1, w2, b2


def generator_reference(x, w1, b1, w2, b2, mxu_dtype=jnp.bfloat16):
    f32 = jnp.float32
    h = jnp.dot(x.astype(mxu_dtype).astype(f32),
                w1.astype(mxu_dtype).astype(f32)) + b1.astype(f32)
    h = jnp.where(h >= 0, h, 0.1 * h)
    y = jnp.dot(h.astype(mxu_dtype).astype(f32),
                w2.astype(mxu_dtype).astype(f32)) + b2.astype(f32)
    return jnp.tanh(y)


if __name__ == "__main__":
    # Small, module-consistent config: latent 16 -> hidden 32 -> output 64, batch 16.
    input_shape = 16
    hidden_units = 32
    output_shape = 64
    batch = 16

    key = jax.random.PRNGKey(0)
    kx, kp = jax.random.split(key)
    x = jax.random.normal(kx, (batch, input_shape), dtype=jnp.float32)
    w1, b1, w2, b2 = init_generator_params(kp, input_shape, hidden_units,
                                           output_shape)

    # One-time param prep (padded + bf16-cast weights; cache and reuse across calls).
    params = prepare_generator_params(w1, b1, w2, b2)

    # Default tile heuristic gives tb=8 -> grid=(2,): exercises the parallel batch grid.
    out = generator_forward(x, params)
    out = jax.block_until_ready(out)

    ref = generator_reference(x, w1, b1, w2, b2)
    assert out.shape == (batch, output_shape)
    max_err = float(jnp.max(jnp.abs(out.astype(jnp.float32) - ref)))
    assert jnp.allclose(out.astype(jnp.float32), ref, atol=1e-4, rtol=1e-4), max_err

    print("KERNEL_OK")
</pallas_src>

<mosaic_0001>
module attributes {stable_mosaic.version = 11 : i64} {
  func.func @generator_kernel(%arg0: i32, %arg1: memref<8x16xf32, #tpu.memory_space<vmem>>, %arg2: memref<16x128xbf16, #tpu.memory_space<vmem>>, %arg3: memref<1x128xf32, #tpu.memory_space<vmem>>, %arg4: memref<128x128xbf16, #tpu.memory_space<vmem>>, %arg5: memref<1x128xf32, #tpu.memory_space<vmem>>, %arg6: memref<8x128xf32, #tpu.memory_space<vmem>>) attributes {dimension_semantics = [#tpu.dimension_semantics<parallel>], iteration_bounds = array<i64: 2>, scalar_prefetch = 0 : i64, scratch_operands = 0 : i64, tpu.core_type = #tpu.core_type<tc>, window_params = [{transform_indices = @transform_0, window_bounds = array<i64: 8, 16>}, {pipeline_mode = #tpu.pipeline_mode<synchronous>, transform_indices = @transform_1, window_bounds = array<i64: 16, 128>}, {pipeline_mode = #tpu.pipeline_mode<synchronous>, transform_indices = @transform_2, window_bounds = array<i64: 1, 128>}, {pipeline_mode = #tpu.pipeline_mode<synchronous>, transform_indices = @transform_3, window_bounds = array<i64: 128, 128>}, {pipeline_mode = #tpu.pipeline_mode<synchronous>, transform_indices = @transform_4, window_bounds = array<i64: 1, 128>}, {transform_indices = @transform_5, window_bounds = array<i64: 8, 128>}]} {
    %c0 = arith.constant 0 : index
    %c0_0 = arith.constant 0 : index
    %0 = vector.load %arg1[%c0, %c0_0] : memref<8x16xf32, #tpu.memory_space<vmem>>, vector<8x16xf32>
    %1 = arith.truncf %0 : vector<8x16xf32> to vector<8x16xbf16>
    %c0_1 = arith.constant 0 : index
    %c0_2 = arith.constant 0 : index
    %2 = vector.load %arg2[%c0_1, %c0_2] : memref<16x128xbf16, #tpu.memory_space<vmem>>, vector<16x128xbf16>
    %cst = arith.constant dense<0.000000e+00> : vector<8x128xf32>
    %3 = tpu.matmul %1, %2, %cst {dimension_numbers = #tpu.dot_dimension_numbers<[1], [0], [0], [1], [0, 0, 1, 1], [], []>} : vector<8x16xbf16>, vector<16x128xbf16>, vector<8x128xf32> -> vector<8x128xf32>
    %c0_3 = arith.constant 0 : index
    %c0_4 = arith.constant 0 : index
    %4 = vector.load %arg3[%c0_3, %c0_4] : memref<1x128xf32, #tpu.memory_space<vmem>>, vector<1x128xf32>
    %5 = vector.broadcast %4 : vector<1x128xf32> to vector<8x128xf32>
    %6 = arith.addf %3, %5 : vector<8x128xf32>
    %cst_5 = arith.constant 0.000000e+00 : f32
    %7 = vector.broadcast %cst_5 : f32 to vector<8x128xf32>
    %8 = arith.cmpf oge, %6, %7 : vector<8x128xf32>
    %cst_6 = arith.constant 1.000000e-01 : f32
    %9 = vector.broadcast %cst_6 : f32 to vector<8x128xf32>
    %10 = arith.mulf %9, %6 : vector<8x128xf32>
    %11 = arith.select %8, %6, %10 : vector<8x128xi1>, vector<8x128xf32>
    %12 = arith.truncf %11 : vector<8x128xf32> to vector<8x128xbf16>
    %c0_7 = arith.constant 0 : index
    %c0_8 = arith.constant 0 : index
    %13 = vector.load %arg4[%c0_7, %c0_8] : memref<128x128xbf16, #tpu.memory_space<vmem>>, vector<128x128xbf16>
    %cst_9 = arith.constant dense<0.000000e+00> : vector<8x128xf32>
    %14 = tpu.matmul %12, %13, %cst_9 {dimension_numbers = #tpu.dot_dimension_numbers<[1], [0], [0], [1], [0, 0, 1, 1], [], []>} : vector<8x128xbf16>, vector<128x128xbf16>, vector<8x128xf32> -> vector<8x128xf32>
    %c0_10 = arith.constant 0 : index
    %c0_11 = arith.constant 0 : index
    %15 = vector.load %arg5[%c0_10, %c0_11] : memref<1x128xf32, #tpu.memory_space<vmem>>, vector<1x128xf32>
    %16 = vector.broadcast %15 : vector<1x128xf32> to vector<8x128xf32>
    %17 = arith.addf %14, %16 : vector<8x128xf32>
    %18 = math.tanh %17 : vector<8x128xf32>
    %c0_12 = arith.constant 0 : index
    %c0_13 = arith.constant 0 : index
    %19 = vector.load %arg6[%c0_12, %c0_13] : memref<8x128xf32, #tpu.memory_space<vmem>>, vector<8x128xf32>
    tpu.vector_store %arg6[%c0_12, %c0_13], %18 {strides = array<i32>} : memref<8x128xf32, #tpu.memory_space<vmem>>, vector<8x128xf32>,
    return
  }
  func.func @transform_0(%arg0: i32) -> (i32, i32) {
    %c0_i32 = arith.constant 0 : i32
    %c0_i32_0 = arith.constant 0 : i32
    return %arg0, %c0_i32 : i32, i32
  }
  func.func @transform_1(%arg0: i32) -> (i32, i32) {
    %c0_i32 = arith.constant 0 : i32
    %c0_i32_0 = arith.constant 0 : i32
    %c0_i32_1 = arith.constant 0 : i32
    return %c0_i32, %c0_i32_0 : i32, i32
  }
  func.func @transform_2(%arg0: i32) -> (i32, i32) {
    %c0_i32 = arith.constant 0 : i32
    %c0_i32_0 = arith.constant 0 : i32
    %c0_i32_1 = arith.constant 0 : i32
    return %c0_i32, %c0_i32_0 : i32, i32
  }
  func.func @transform_3(%arg0: i32) -> (i32, i32) {
    %c0_i32 = arith.constant 0 : i32
    %c0_i32_0 = arith.constant 0 : i32
    %c0_i32_1 = arith.constant 0 : i32
    return %c0_i32, %c0_i32_0 : i32, i32
  }
  func.func @transform_4(%arg0: i32) -> (i32, i32) {
    %c0_i32 = arith.constant 0 : i32
    %c0_i32_0 = arith.constant 0 : i32
    %c0_i32_1 = arith.constant 0 : i32
    return %c0_i32, %c0_i32_0 : i32, i32
  }
  func.func @transform_5(%arg0: i32) -> (i32, i32) {
    %c0_i32 = arith.constant 0 : i32
    %c0_i32_0 = arith.constant 0 : i32
    return %arg0, %c0_i32 : i32, i32
  }
}

</mosaic_0001>

<llo_original>
// kernel: tpu_custom_call.1
$region0: #{tpu_custom_call.1}
  #allocation0 [shape = 'u32[]', space=smem, size = 0x4, offset = 0x4, fixed_abs, tag = 'smem constant byte address 0x4 - core index']
  #allocation1 [shape = 'u32[144,128]{1,0:T(1,128)}', space=vmem, size = 0x12000, scoped, tag = 'internal scratch']
  %s0 = inlined_call_operand.hbm [shape: f32[16,16], index: 0, kind: input, shape index: {}]
  %s1 = inlined_call_operand.hbm [shape: bf16[16,128], index: 1, kind: input, shape index: {}]
  %s2 = inlined_call_operand.vmem [shape: f32[1,128], index: 2, kind: input, shape index: {}]
  %s3 = inlined_call_operand.hbm [shape: bf16[128,128], index: 3, kind: input, shape index: {}]
  %s4 = inlined_call_operand.vmem [shape: f32[1,128], index: 4, kind: input, shape index: {}]
  %s5 = inlined_call_operand.hbm [shape: f32[16,128], index: 5, kind: output, shape index: {}]
  %s6 = sld [smem:[#allocation0]]
  $region65: #{tpu_custom_call.1} parent=0
    _
  %s8 = ssub.s32 1, %s6
  %s9 = scalar_select 0, %s8, %s6
  $region1: #{tpu_custom_call.1} parent=0
    #allocation2 [shape = 'u8[8192]{0}', space=vmem, size = 0x2000, scoped, tag = 'input window, operand 0']
    #allocation3 [shape = 's32[2]{0}', space=sflag, size = 0x8, scoped, tag = 'scoped memory for tpu_custom_call.1']
    #allocation4 [shape = 's32[2]{0}', space=sflag, size = 0x8, scoped, tag = 'scoped memory for tpu_custom_call.1']
    #allocation5 [shape = 'u8[4096]{0}', space=vmem, size = 0x1000, scoped, tag = 'input window, operand 1, single buffered']
    #allocation6 [shape = 's32[1]{0}', space=sflag, size = 0x4, scoped, tag = 'scoped memory for tpu_custom_call.1']
    #allocation7 [shape = 'u8[32768]{0}', space=vmem, size = 0x8000, scoped, tag = 'input window, operand 3, single buffered']
    #allocation8 [shape = 'u8[8192]{0}', space=vmem, size = 0x2000, scoped, tag = 'output window, operand 0']
    %10 = vsyncpa [#allocation3], 0
    %s11 = scalar_lea.sflag [#allocation3], 1
    %12 = vsyncpa %s11, 0
    %13 = vsyncpa [#allocation6], 0
    %14 = vsyncpa [#allocation4], 0
    %s15 = scalar_lea.sflag [#allocation4], 1
    %16 = vsyncpa %s15, 0
    loop: start=0, step=1, limit=4
    $region2: #{tpu_custom_call.1} parent=1 // loop_pre_header
      _
    $region3: #{tpu_custom_call.1} parent=1 // loop_header
      %s18 = sphi 0, %s22
      %p19 = scmp.ge.s32.totalorder %s18, 4
      %s28 = sphi 0, %s30
      %s31 = sphi 0, %s28
      %s32 = sphi 0, %s31
      %s48 = sphi 0, %s32
      %s52 = sphi 0, %s52
      %s54 = sphi 0, %s52
      %s55 = sphi 0, %s54
      %s69 = sphi 0, %s55
      %s73 = sphi 0, %s73
      %s75 = sphi 0, %s73
      %s76 = sphi 0, %s75
      %s90 = sphi 0, %s76
      %s94 = sphi 0, %s94
      %s96 = sphi 0, %s94
      %s97 = sphi 0, %s96
      %s111 = sphi 0, %s97
      %s115 = sphi 0, %s115
      %s117 = sphi 0, %s115
      %s118 = sphi 0, %s117
      %s132 = sphi 0, %s118
      %s138 = sphi 0, %s140
      %s141 = sphi 0, %s138
      %s142 = sphi 0, %s141
      %s158 = sphi 0, %s142
    $region4: #{tpu_custom_call.1} parent=1 // loop_header_branch
      %21 = sbr.rel (%p19) target = $region8
    $region5: #{tpu_custom_call.1} parent=1 // loop_body
      %s23 = ssub.s32 %s18, 1
      %s24 = ssub.s32 %s18, 2
      %s25 = sadd.s32 %s18, 1
      %s26 = ssub.s32 %s18, %s25
      %p27 = scmp.eq.s32.totalorder %s26, 0
      %s29 = sadd.s32 %s28, 1
      %s30 = scalar_select %p27, %s28, %s29
      %p33 = pneg %p27
      %p34 = scmp.eq.s32.totalorder %s18, 1
      %p35 = por %p33, %p34
      %p36 = scmp.ne.s32.totalorder %s28, %s31
      %p37 = scmp.eq.s32.totalorder %s18, 0
      %p38 = por %p36, %p37
      %p39 = scmp.ne.s32.totalorder %s28, %s31
      %p40 = scmp.eq.s32.totalorder %s23, 1
      %p41 = por %p39, %p40
      %p42 = scmp.ne.s32.totalorder %s31, %s32
      %p43 = scmp.eq.s32.totalorder %s23, 0
      %p44 = por %p42, %p43
      %p45 = scmp.ne.s32.totalorder %s31, %s32
      %p46 = scmp.eq.s32.totalorder %s24, 1
      %p47 = por %p45, %p46
      %p49 = scmp.ne.s32.totalorder %s32, %s48
      %p50 = scmp.eq.s32.totalorder %s24, 0
      %p51 = por %p49, %p50
      %s53 = sadd.s32 %s52, 1
      %p56 = scmp.eq.s32.totalorder %s18, 1
      %p57 = scmp.ne.s32.totalorder %s52, %s54
      %p58 = scmp.eq.s32.totalorder %s18, 0
      %p59 = por %p57, %p58
      %p60 = scmp.ne.s32.totalorder %s52, %s54
      %p61 = scmp.eq.s32.totalorder %s23, 1
      %p62 = por %p60, %p61
      %p63 = scmp.ne.s32.totalorder %s54, %s55
      %p64 = scmp.eq.s32.totalorder %s23, 0
      %p65 = por %p63, %p64
      %p66 = scmp.ne.s32.totalorder %s54, %s55
      %p67 = scmp.eq.s32.totalorder %s24, 1
      %p68 = por %p66, %p67
      %p70 = scmp.ne.s32.totalorder %s55, %s69
      %p71 = scmp.eq.s32.totalorder %s24, 0
      %p72 = por %p70, %p71
      %s74 = sadd.s32 %s73, 1
      %p77 = scmp.eq.s32.totalorder %s18, 1
      %p78 = scmp.ne.s32.totalorder %s73, %s75
      %p79 = scmp.eq.s32.totalorder %s18, 0
      %p80 = por %p78, %p79
      %p81 = scmp.ne.s32.totalorder %s73, %s75
      %p82 = scmp.eq.s32.totalorder %s23, 1
      %p83 = por %p81, %p82
      %p84 = scmp.ne.s32.totalorder %s75, %s76
      %p85 = scmp.eq.s32.totalorder %s23, 0
      %p86 = por %p84, %p85
      %p87 = scmp.ne.s32.totalorder %s75, %s76
      %p88 = scmp.eq.s32.totalorder %s24, 1
      %p89 = por %p87, %p88
      %p91 = scmp.ne.s32.totalorder %s76, %s90
      %p92 = scmp.eq.s32.totalorder %s24, 0
      %p93 = por %p91, %p92
      %s95 = sadd.s32 %s94, 1
      %p98 = scmp.eq.s32.totalorder %s18, 1
      %p99 = scmp.ne.s32.totalorder %s94, %s96
      %p100 = scmp.eq.s32.totalorder %s18, 0
      %p101 = por %p99, %p100
      %p102 = scmp.ne.s32.totalorder %s94, %s96
      %p103 = scmp.eq.s32.totalorder %s23, 1
      %p104 = por %p102, %p103
      %p105 = scmp.ne.s32.totalorder %s96, %s97
      %p106 = scmp.eq.s32.totalorder %s23, 0
      %p107 = por %p105, %p106
      %p108 = scmp.ne.s32.totalorder %s96, %s97
      %p109 = scmp.eq.s32.totalorder %s24, 1
      %p110 = por %p108, %p109
      %p112 = scmp.ne.s32.totalorder %s97, %s111
      %p113 = scmp.eq.s32.totalorder %s24, 0
      %p114 = por %p112, %p113
      %s116 = sadd.s32 %s115, 1
      %p119 = scmp.eq.s32.totalorder %s18, 1
      %p120 = scmp.ne.s32.totalorder %s115, %s117
      %p121 = scmp.eq.s32.totalorder %s18, 0
      %p122 = por %p120, %p121
      %p123 = scmp.ne.s32.totalorder %s115, %s117
      %p124 = scmp.eq.s32.totalorder %s23, 1
      %p125 = por %p123, %p124
      %p126 = scmp.ne.s32.totalorder %s117, %s118
      %p127 = scmp.eq.s32.totalorder %s23, 0
      %p128 = por %p126, %p127
      %p129 = scmp.ne.s32.totalorder %s117, %s118
      %p130 = scmp.eq.s32.totalorder %s24, 1
      %p131 = por %p129, %p130
      %p133 = scmp.ne.s32.totalorder %s118, %s132
      %p134 = scmp.eq.s32.totalorder %s24, 0
      %p135 = por %p133, %p134
      %s136 = ssub.s32 %s18, %s25
      %p137 = scmp.eq.s32.totalorder %s136, 0
      %s139 = sadd.s32 %s138, 1
      %s140 = scalar_select %p137, %s138, %s139
      %p143 = pneg %p137
      %p144 = scmp.eq.s32.totalorder %s18, 1
      %p145 = por %p143, %p144
      %p146 = scmp.ne.s32.totalorder %s138, %s141
      %p147 = scmp.eq.s32.totalorder %s18, 0
      %p148 = por %p146, %p147
      %p149 = scmp.ne.s32.totalorder %s138, %s141
      %p150 = scmp.eq.s32.totalorder %s23, 1
      %p151 = por %p149, %p150
      %p152 = scmp.ne.s32.totalorder %s141, %s142
      %p153 = scmp.eq.s32.totalorder %s23, 0
      %p154 = por %p152, %p153
      %p155 = scmp.ne.s32.totalorder %s141, %s142
      %p156 = scmp.eq.s32.totalorder %s24, 1
      %p157 = por %p155, %p156
      %p159 = scmp.ne.s32.totalorder %s142, %s158
      %p160 = scmp.eq.s32.totalorder %s24, 0
      %p161 = por %p159, %p160
      %p162 = scmp.le.s32.totalorder 1, %s18
      %p163 = scmp.lt.s32.totalorder %s18, 3
      %p164 = pnand %p162, %p163
      %p165 = pneg %p164
      // Predicated region
      $region9: #{tpu_custom_call.1} parent=5 // pred_check
        _
      $region10: #{tpu_custom_call.1} parent=5 // pred_check_branch
        %167 = sbr.rel (%p164) target = $region12
      $region11: #{tpu_custom_call.1} parent=5 // pred_region
        %s168 = ssub.s32 %s18, 1
        // Predicated region
        $region13: #{tpu_custom_call.1} parent=11 // pred_check
          %p169 = pneg %p65
        $region14: #{tpu_custom_call.1} parent=11 // pred_check_branch
          %171 = sbr.rel (%p169) target = $region16
        $region15: #{tpu_custom_call.1} parent=11 // pred_region
          %s173 = ssub.s32 128, 128
          %174 = vsyncadd [#allocation6], %s173
          %s175 = sshll.u32 [#allocation5], 4
          %s176 = int_to_ptr.vmem [resolvable:$true] %s175
          %181 = dma.hbm_to_vmem [thread:$0]  %s1, 128, %s176, [#allocation6], 64, 64, 4
        $region16: #{tpu_custom_call.1} parent=11 // pred_fallthru
          _
        // Predicated region
        $region17: #{tpu_custom_call.1} parent=11 // pred_check
          %p182 = pneg %p86
        $region18: #{tpu_custom_call.1} parent=11 // pred_check_branch
          %184 = sbr.rel (%p182) target = $region20
        $region19: #{tpu_custom_call.1} parent=11 // pred_region
          _
        $region20: #{tpu_custom_call.1} parent=11 // pred_fallthru
          _
        // Predicated region
        $region21: #{tpu_custom_call.1} parent=11 // pred_check
          %p185 = pneg %p107
        $region22: #{tpu_custom_call.1} parent=11 // pred_check_branch
          %187 = sbr.rel (%p185) target = $region24
        $region23: #{tpu_custom_call.1} parent=11 // pred_region
          %s189 = ssub.s32 1024, 1024
          %190 = vsyncadd [#allocation6], %s189
          %s191 = sshll.u32 [#allocation7], 4
          %s192 = int_to_ptr.vmem [resolvable:$true] %s191
          %197 = dma.hbm_to_vmem [thread:$0]  %s3, 1024, %s192, [#allocation6], 64, 64, 4
        $region24: #{tpu_custom_call.1} parent=11 // pred_fallthru
          _
        // Predicated region
        $region25: #{tpu_custom_call.1} parent=11 // pred_check
          %p198 = pneg %p128
        $region26: #{tpu_custom_call.1} parent=11 // pred_check_branch
          %200 = sbr.rel (%p198) target = $region28
        $region27: #{tpu_custom_call.1} parent=11 // pred_region
          _
        $region28: #{tpu_custom_call.1} parent=11 // pred_fallthru
          _
      $region12: #{tpu_custom_call.1} parent=5 // pred_fallthru
        _
      %p201 = scmp.lt.s32.totalorder %s18, 2
      // Predicated region
      $region29: #{tpu_custom_call.1} parent=5 // pred_check
        %p202 = pneg %p201
      $region30: #{tpu_custom_call.1} parent=5 // pred_check_branch
        %204 = sbr.rel (%p202) target = $region32
      $region31: #{tpu_custom_call.1} parent=5 // pred_region
        // Predicated region
        $region33: #{tpu_custom_call.1} parent=31 // pred_check
          %p205 = pneg %p38
        $region34: #{tpu_custom_call.1} parent=31 // pred_check_branch
          %207 = sbr.rel (%p205) target = $region36
        $region35: #{tpu_custom_call.1} parent=31 // pred_region
          %s208 = sand.u32 %s28, 1
          %s209 = scalar_lea.sflag [#allocation3], %s208
          %s210 = sand.u32 %s28, 1
          %s211 = smul.addr %s210, 8
          %s212 = scalar_lea.vmem [#allocation2], %s211
          %s214 = ssub.s32 128, 128
          %215 = vsyncadd %s209, %s214
          %s216 = smul.addr %s18, 128
          %s217 = scalar_lea.hbm %s0, %s216
          %s219 = sshll.u32 %s212, 4
          %s220 = int_to_ptr.vmem [resolvable:$true] %s219
          %222 = dma.hbm_to_vmem [thread:$0]  %s217, 128, %s220, %s209
        $region36: #{tpu_custom_call.1} parent=31 // pred_fallthru
          _
      $region32: #{tpu_custom_call.1} parent=5 // pred_fallthru
        _
      %p223 = scmp.le.s32.totalorder 1, %s18
      %p224 = scmp.lt.s32.totalorder %s18, 3
      %p225 = pnand %p223, %p224
      %p226 = pneg %p225
      // Predicated region
      $region37: #{tpu_custom_call.1} parent=5 // pred_check
        _
      $region38: #{tpu_custom_call.1} parent=5 // pred_check_branch
        %228 = sbr.rel (%p225) target = $region40
      $region39: #{tpu_custom_call.1} parent=5 // pred_region
        %s229 = ssub.s32 %s18, 1
        %s230 = sand.u32 %s31, 1
        %s231 = scalar_lea.sflag [#allocation3], %s230
        %s232 = sand.u32 %s31, 1
        %s233 = smul.addr %s232, 8
        %s234 = scalar_lea.vmem [#allocation2], %s233
        // Predicated region
        $region41: #{tpu_custom_call.1} parent=39 // pred_check
          %p235 = pneg %p44
        $region42: #{tpu_custom_call.1} parent=39 // pred_check_branch
          %237 = sbr.rel (%p235) target = $region44
        $region43: #{tpu_custom_call.1} parent=39 // pred_region
          %238 = dma.done %s231, 128
        $region44: #{tpu_custom_call.1} parent=39 // pred_fallthru
          _
        // Predicated region
        $region45: #{tpu_custom_call.1} parent=39 // pred_check
          %p239 = pneg %p65
        $region46: #{tpu_custom_call.1} parent=39 // pred_check_branch
          %241 = sbr.rel (%p239) target = $region48
        $region47: #{tpu_custom_call.1} parent=39 // pred_region
          %242 = dma.done [#allocation6], 128
        $region48: #{tpu_custom_call.1} parent=39 // pred_fallthru
          _
        // Predicated region
        $region49: #{tpu_custom_call.1} parent=39 // pred_check
          %p243 = pneg %p107
        $region50: #{tpu_custom_call.1} parent=39 // pred_check_branch
          %245 = sbr.rel (%p243) target = $region52
        $region51: #{tpu_custom_call.1} parent=39 // pred_region
          %246 = dma.done [#allocation6], 1024
        $region52: #{tpu_custom_call.1} parent=39 // pred_fallthru
          _
        %s247 = sand.u32 %s31, 1
        %s248 = scalar_lea.sflag [#allocation3], %s247
        %s249 = sand.u32 %s31, 1
        %s250 = smul.addr %s249, 8
        %s251 = scalar_lea.vmem [#allocation2], %s250
        %p252 = pneg %p44
        %p253 = pneg %p41
        %p254 = pneg %p65
        %p255 = pneg %p62
        %p256 = pneg %p86
        %p257 = pneg %p83
        %p258 = pneg %p107
        %p259 = pneg %p104
        %p260 = pneg %p128
        %p261 = pneg %p125
        %p262 = pneg %p154
        %p263 = pneg %p151
        %s264 = sand.u32 %s141, 1
        %s265 = scalar_lea.sflag [#allocation4], %s264
        %s266 = sand.u32 %s141, 1
        %s267 = smul.addr %s266, 8
        %s268 = scalar_lea.vmem [#allocation8], %s267
        %v270 = vld [vmem:[%s234] sm:$0xff]
        %v271 = vpack.c.bf16 %v270, %v270
        %v272 = vld [vmem:[#allocation5] sm:$0xf]
        %v273 = vld [vmem:[#allocation5 + $0x4] sm:$0xf]
        %v274 = vld [vmem:[%s2] sm:$0x1]
        %v276 = vlaneseq
        %v277 = vshrl.u32 %v276, 7
        %v278 = vsub.s32 0, %v277
        %v279 = vrot.slane %v274, %v278
        %v283 = vunpack.c.l.b16 %v272
        %v284 = vunpack.c.l.b16 %v273
        %v285 = vpack.c.b16 %v284, %v283
        %vm287 = vcmask 130048
        %v289 = vsel %vm287, %v271, 0
        %291 = vmatprep.subr.bf16.mxu0 0
        %292 = vmatpush1.bf16.msra.mxu0 0
        %293 = vmatprep.subr.bf16.mxu0 0
        %294 = vmatpush1.bf16.msra.mxu0 0
        %295 = vmatprep.subr.bf16.mxu0 0
        %296 = vmatpush1.bf16.msra.mxu0 0
        %297 = vmatprep.subr.bf16.mxu0 0
        %298 = vmatpush1.bf16.msra.mxu0 0
        %299 = vmatprep.subr.bf16.mxu0 0
        %300 = vmatpush1.bf16.msra.mxu0 0
        %301 = vmatprep.subr.bf16.mxu0 0
        %302 = vmatpush1.bf16.msra.mxu0 0
        %303 = vmatprep.subr.bf16.mxu0 0
        %304 = vmatpush1.bf16.msra.mxu0 0
        %305 = vmatprep.subr.bf16.mxu0 0
        %306 = vmatpush1.bf16.msra.mxu0 %v285
        %307 = vmatprep.subr.bf16.mxu0 0
        %308 = vmatpush2.bf16.msra.mxu0 0
        %309 = vmatprep.subr.bf16.mxu0 0
        %310 = vmatpush2.bf16.msra.mxu0 0
        %311 = vmatprep.subr.bf16.mxu0 0
        %312 = vmatpush2.bf16.msra.mxu0 0
        %313 = vmatprep.subr.bf16.mxu0 0
        %314 = vmatpush2.bf16.msra.mxu0 0
        %315 = vmatprep.subr.bf16.mxu0 0
        %316 = vmatpush2.bf16.msra.mxu0 0
        %317 = vmatprep.subr.bf16.mxu0 0
        %318 = vmatpush2.bf16.msra.mxu0 0
        %319 = vmatprep.subr.bf16.mxu0 0
        %320 = vmatpush2.bf16.msra.mxu0 0
        %321 = vmatprep.subr.bf16.mxu0 0
        %322 = vmatpush2.bf16.msra.mxu0 0
        %323 = vmatprep.mubr.bf16.mxu0 0
        %324 = vmatmul.mubr.bf16.gmra.mxu0 %v289
        %v325 = vpop.f32.mrf.mxu0
        %v326 = vadd.f32 %v279, %v325
        %v327 = vpop.f32.mrf.mxu0
        %v328 = vpop.f32.mrf.mxu0
        %v329 = vpop.f32.mrf.mxu0
        %330 = vdwg.mxu0
        %vm331 = vcmp.ge.f32.partialorder %v326, 0.0
        %v332 = vmul.f32 %v326, 0.1
        %v333 = vsel %vm331, %v326, %v332
        %v334 = vpack.c.bf16 %v333, %v333
        %v335 = vld [vmem:[#allocation7] sm:$0xf]
        %v336 = vld [vmem:[#allocation7 + $0x4] sm:$0xf]
        %v337 = vld [vmem:[#allocation7 + $0x8] sm:$0xf]
        %v338 = vld [vmem:[#allocation7 + $0xc] sm:$0xf]
        %v339 = vld [vmem:[#allocation7 + $0x10] sm:$0xf]
        %v340 = vld [vmem:[#allocation7 + $0x14] sm:$0xf]
        %v341 = vld [vmem:[#allocation7 + $0x18] sm:$0xf]
        %v342 = vld [vmem:[#allocation7 + $0x1c] sm:$0xf]
        %v343 = vld [vmem:[#allocation7 + $0x20] sm:$0xf]
        %v344 = vld [vmem:[#allocation7 + $0x24] sm:$0xf]
        %v345 = vld [vmem:[#allocation7 + $0x28] sm:$0xf]
        %v346 = vld [vmem:[#allocation7 + $0x2c] sm:$0xf]
        %v347 = vld [vmem:[#allocation7 + $0x30] sm:$0xf]
        %v348 = vld [vmem:[#allocation7 + $0x34] sm:$0xf]
        %v349 = vld [vmem:[#allocation7 + $0x38] sm:$0xf]
        %v350 = vld [vmem:[#allocation7 + $0x3c] sm:$0xf]
        %v351 = vld [vmem:[%s4] sm:$0x1]
        %v353 = vlaneseq
        %v354 = vshrl.u32 %v353, 7
        %v355 = vsub.s32 0, %v354
        %v356 = vrot.slane %v351, %v355
        %v374 = vunpack.c.l.b16 %v335
        %v375 = vunpack.c.l.b16 %v336
        %v376 = vunpack.c.l.b16 %v337
        %v377 = vunpack.c.l.b16 %v338
        %v378 = vunpack.c.l.b16 %v339
        %v379 = vunpack.c.l.b16 %v340
        %v380 = vunpack.c.l.b16 %v341
        %v381 = vunpack.c.l.b16 %v342
        %v382 = vunpack.c.l.b16 %v343
        %v383 = vunpack.c.l.b16 %v344
        %v384 = vunpack.c.l.b16 %v345
        %v385 = vunpack.c.l.b16 %v346
        %v386 = vunpack.c.l.b16 %v347
        %v387 = vunpack.c.l.b16 %v348
        %v388 = vunpack.c.l.b16 %v349
        %v389 = vunpack.c.l.b16 %v350
        %v390 = vpack.c.b16 %v375, %v374
        %v391 = vpack.c.b16 %v377, %v376
        %v392 = vpack.c.b16 %v379, %v378
        %v393 = vpack.c.b16 %v381, %v380
        %v394 = vpack.c.b16 %v383, %v382
        %v395 = vpack.c.b16 %v385, %v384
        %v396 = vpack.c.b16 %v387, %v386
        %v397 = vpack.c.b16 %v389, %v388
        %406 = vmatprep.subr.bf16.mxu0 0
        %407 = vmatpush1.bf16.msra.mxu0 %v397
        %408 = vmatprep.subr.bf16.mxu0 0
        %409 = vmatpush1.bf16.msra.mxu0 %v396
        %410 = vmatprep.subr.bf16.mxu0 0
        %411 = vmatpush1.bf16.msra.mxu0 %v395
        %412 = vmatprep.subr.bf16.mxu0 0
        %413 = vmatpush1.bf16.msra.mxu0 %v394
        %414 = vmatprep.subr.bf16.mxu0 0
        %415 = vmatpush1.bf16.msra.mxu0 %v393
        %416 = vmatprep.subr.bf16.mxu0 0
        %417 = vmatpush1.bf16.msra.mxu0 %v392
        %418 = vmatprep.subr.bf16.mxu0 0
        %419 = vmatpush1.bf16.msra.mxu0 %v391
        %420 = vmatprep.subr.bf16.mxu0 0
        %421 = vmatpush1.bf16.msra.mxu0 %v390
        %422 = vmatprep.subr.bf16.mxu0 0
        %423 = vmatpush2.bf16.msra.mxu0 0
        %424 = vmatprep.subr.bf16.mxu0 0
        %425 = vmatpush2.bf16.msra.mxu0 0
        %426 = vmatprep.subr.bf16.mxu0 0
        %427 = vmatpush2.bf16.msra.mxu0 0
        %428 = vmatprep.subr.bf16.mxu0 0
        %429 = vmatpush2.bf16.msra.mxu0 0
        %430 = vmatprep.subr.bf16.mxu0 0
        %431 = vmatpush2.bf16.msra.mxu0 0
        %432 = vmatprep.subr.bf16.mxu0 0
        %433 = vmatpush2.bf16.msra.mxu0 0
        %434 = vmatprep.subr.bf16.mxu0 0
        %435 = vmatpush2.bf16.msra.mxu0 0
        %436 = vmatprep.subr.bf16.mxu0 0
        %437 = vmatpush2.bf16.msra.mxu0 0
        %438 = vmatprep.mubr.bf16.mxu0 0
        %439 = vmatmul.mubr.bf16.gmra.mxu0 %v334
        %v440 = vpop.f32.mrf.mxu0
        %v441 = vadd.f32 %v356, %v440
        %v442 = vpop.f32.mrf.mxu0
        %v443 = vpop.f32.mrf.mxu0
        %v444 = vpop.f32.mrf.mxu0
        %445 = vdwg.mxu0
        %v446 = vtanh.pop %v441
        %447 = vst [vmem:[%s268] sm:$0xff] %v446
        %s448 = sand.u32 %s141, 1
        %s449 = scalar_lea.sflag [#allocation4], %s448
        %s450 = sand.u32 %s141, 1
        %s451 = smul.addr %s450, 8
        %s452 = scalar_lea.vmem [#allocation8], %s451
        // Predicated region
        $region53: #{tpu_custom_call.1} parent=39 // pred_check
          %p453 = pneg %p151
        $region54: #{tpu_custom_call.1} parent=39 // pred_check_branch
          %455 = sbr.rel (%p453) target = $region56
        $region55: #{tpu_custom_call.1} parent=39 // pred_region
          %s457 = ssub.s32 128, 128
          %458 = vsyncadd %s449, %s457
          %s459 = smul.addr %s23, 128
          %s460 = scalar_lea.hbm %s5, %s459
          %s462 = sshll.u32 %s452, 4
          %s463 = int_to_ptr.vmem [resolvable:$true] %s462
          %465 = dma.vmem_to_hbm [thread:$0]  %s463, 128, %s460, %s449
        $region56: #{tpu_custom_call.1} parent=39 // pred_fallthru
          _
      $region40: #{tpu_custom_call.1} parent=5 // pred_fallthru
        _
      %p466 = scmp.le.s32.totalorder 2, %s18
      // Predicated region
      $region57: #{tpu_custom_call.1} parent=5 // pred_check
        %p467 = pneg %p466
      $region58: #{tpu_custom_call.1} parent=5 // pred_check_branch
        %469 = sbr.rel (%p467) target = $region60
      $region59: #{tpu_custom_call.1} parent=5 // pred_region
        %s470 = ssub.s32 %s18, 2
        // Predicated region
        $region61: #{tpu_custom_call.1} parent=59 // pred_check
          %p471 = pneg %p157
        $region62: #{tpu_custom_call.1} parent=59 // pred_check_branch
          %473 = sbr.rel (%p471) target = $region64
        $region63: #{tpu_custom_call.1} parent=59 // pred_region
          %s474 = sand.u32 %s142, 1
          %s475 = scalar_lea.sflag [#allocation4], %s474
          %s476 = sand.u32 %s142, 1
          %s477 = smul.addr %s476, 8
          %s478 = scalar_lea.vmem [#allocation8], %s477
          %479 = dma.done %s475, 128
        $region64: #{tpu_custom_call.1} parent=59 // pred_fallthru
          _
      $region60: #{tpu_custom_call.1} parent=5 // pred_fallthru
        _
    $region6: #{tpu_custom_call.1} parent=1 // loop_footer
      %s22 = sadd.s32 1, %s18
    $region7: #{tpu_custom_call.1} parent=1 // loop_footer_branch
      %17 = sbr.rel target = $region3
    $region8: #{tpu_custom_call.1} parent=1 // loop_exit
      _
    %480 = vsyncpa [#allocation3], 1
    %s481 = scalar_lea.sflag [#allocation3], 1
    %482 = vsyncpa %s481, 1
    %483 = vsyncpa [#allocation6], 1
    %484 = vsyncpa [#allocation4], 1
    %s485 = scalar_lea.sflag [#allocation4], 1
    %486 = vsyncpa %s485, 1

</llo_original>
